<compile_context>
chip_gen: v7x
topology: tpu7x:2x2x1
jax: 0.10.0
libtpu: 0.0.40
codegen_flags: <defaults>
</compile_context>

<pallas_src>
import functools

import jax
import jax.numpy as jnp
from jax.experimental import pallas as pl
from jax.experimental.pallas import tpu as pltpu

SUBLANE = 8  # second-to-last dim granularity for batch tiles


def _round_up(n, m):
    return ((n + m - 1) // m) * m


def autoencoder_kernel(x_ref, we_ref, be_ref, wd_ref, bd_ref, out_ref, z_ref):
    # Encoder: z = relu(x @ W_enc + b_enc); MXU accumulates in f32.
    z = jnp.dot(x_ref[...], we_ref[...], preferred_element_type=jnp.float32)
    z = jnp.maximum(z + be_ref[...], 0.0)               # bias + ReLU in f32 (VPU)
    z_ref[...] = z.astype(z_ref.dtype)
    # Decoder: out = z @ W_dec + b_dec (MXU fed in the weight dtype, f32 acc).
    out = jnp.dot(z.astype(wd_ref.dtype), wd_ref[...],
                  preferred_element_type=jnp.float32)
    out_ref[...] = (out + bd_ref[...]).astype(out_ref.dtype)


def _choose_batch_tiling(B, max_batch_tile, min_grid_steps):
    """Pick (TM, Bp, grid_steps): sublane-aligned tile, minimal tail padding,
    >=min_grid_steps steps when the batch allows (balances v7x's 2 TCs)."""
    b8 = _round_up(B, SUBLANE)
    steps = max(min_grid_steps, pl.cdiv(b8, max_batch_tile))
    tm = _round_up(pl.cdiv(b8, steps), SUBLANE)
    tm = max(SUBLANE, min(tm, _round_up(max_batch_tile, SUBLANE)))
    grid_steps = pl.cdiv(b8, tm)
    bp = grid_steps * tm
    return tm, bp, grid_steps


@functools.partial(
    jax.jit,
    static_argnames=("compute_dtype", "max_batch_tile", "min_grid_steps"))
def autoencoder_linear(x, w_enc, b_enc, w_dec, b_dec, *,
                       compute_dtype=None, max_batch_tile=4096,
                       min_grid_steps=2):
    """x: (B, D_in); w_enc: (D_in, L); b_enc: (1, L); w_dec: (L, D_in); b_dec: (1, D_in).
    Returns (out, z) matching AutoencoderLinear.forward.

    compute_dtype: optionally cast x and weights (e.g. jnp.bfloat16 on v6e/v7x)
    at the call boundary; accumulation and the bias/ReLU epilogue stay in f32.
    Outputs keep x's original dtype."""
    B, D_in = x.shape
    L = w_enc.shape[1]
    out_dtype = x.dtype

    if compute_dtype is not None:
        x = x.astype(compute_dtype)
        w_enc = w_enc.astype(compute_dtype)
        w_dec = w_dec.astype(compute_dtype)
    b_enc = b_enc.astype(jnp.float32)
    b_dec = b_dec.astype(jnp.float32)

    # Batch tiling only — feature dims stay at their true (tiny) extents.
    TM, Bp, grid_steps = _choose_batch_tiling(B, max_batch_tile, min_grid_steps)
    if Bp != B:
        xp = jnp.zeros((Bp, D_in), x.dtype).at[:B, :].set(x)
    else:
        xp = x

    # VMEM budget: double-buffered x/out/z tiles + (conservatively double-buffered)
    # resident weights/biases, plus a little fixed headroom for internal scratch.
    isz = jnp.dtype(xp.dtype).itemsize
    osz = jnp.dtype(out_dtype).itemsize
    tile_bytes = TM * D_in * isz + TM * D_in * osz + TM * L * osz
    resident_bytes = 2 * (D_in * L) * isz + (L + D_in) * 4
    vmem_limit = int(2 * tile_bytes + 2 * resident_bytes + (8 << 20))

    out_p, z_p = pl.pallas_call(
        autoencoder_kernel,
        out_shape=(
            jax.ShapeDtypeStruct((Bp, D_in), out_dtype),   # out = decode(encode(x))
            jax.ShapeDtypeStruct((Bp, L), out_dtype),      # z   = latent
        ),
        grid=(grid_steps,),
        in_specs=[
            pl.BlockSpec((TM, D_in), lambda i: (i, 0)),    # x: tiled over batch
            pl.BlockSpec((D_in, L), lambda i: (0, 0)),     # W_enc: resident (full dims)
            pl.BlockSpec((1, L), lambda i: (0, 0)),        # b_enc: resident
            pl.BlockSpec((L, D_in), lambda i: (0, 0)),     # W_dec: resident
            pl.BlockSpec((1, D_in), lambda i: (0, 0)),     # b_dec: resident
        ],
        out_specs=(
            pl.BlockSpec((TM, D_in), lambda i: (i, 0)),
            pl.BlockSpec((TM, L), lambda i: (i, 0)),
        ),
        compiler_params=pltpu.CompilerParams(
            dimension_semantics=("parallel",),             # batch axis: megacore-shardable
            vmem_limit_bytes=vmem_limit,
        ),
    )(xp, w_enc, b_enc, w_dec, b_dec)

    if Bp != B:
        return out_p[:B], z_p[:B]
    return out_p, z_p


def _init_linear_params(key, in_features, out_features):
    """PyTorch-style init: U(-1/sqrt(in), 1/sqrt(in)) for W and b.
    W is returned already transposed to (in_features, out_features)."""
    k_w, k_b = jax.random.split(key)
    bound = 1.0 / jnp.sqrt(jnp.float32(in_features))
    w = jax.random.uniform(k_w, (in_features, out_features), jnp.float32, -bound, bound)
    b = jax.random.uniform(k_b, (1, out_features), jnp.float32, -bound, bound)
    return w, b


if __name__ == "__main__":
    input_shape = 16   # original env state dim
    latent_shape = 8   # latent dim the RL agent trains on

    key = jax.random.PRNGKey(0)
    k_x, k_enc, k_dec, k_x2 = jax.random.split(key, 4)

    w_enc, b_enc = _init_linear_params(k_enc, input_shape, latent_shape)
    w_dec, b_dec = _init_linear_params(k_dec, latent_shape, input_shape)

    # --- small toy batch (matches the module's intended sizes) ---
    x = jax.random.normal(k_x, (8, input_shape), jnp.float32)
    out, z = autoencoder_linear(x, w_enc, b_enc, w_dec, b_dec)
    jax.block_until_ready((out, z))

    z_ref = jnp.maximum(x @ w_enc + b_enc, 0.0)
    out_ref = z_ref @ w_dec + b_dec
    assert out.shape == (8, input_shape) and z.shape == (8, latent_shape)
    assert jnp.allclose(z, z_ref, atol=1e-5), "latent mismatch (small batch)"
    assert jnp.allclose(out, out_ref, atol=1e-5), "reconstruction mismatch (small batch)"

    # --- larger, awkward batch: exercises the multi-tile balanced grid + tail pad ---
    x2 = jax.random.normal(k_x2, (1027, input_shape), jnp.float32)
    out2, z2 = autoencoder_linear(x2, w_enc, b_enc, w_dec, b_dec)
    jax.block_until_ready((out2, z2))

    z2_ref = jnp.maximum(x2 @ w_enc + b_enc, 0.0)
    out2_ref = z2_ref @ w_dec + b_dec
    assert out2.shape == (1027, input_shape) and z2.shape == (1027, latent_shape)
    assert jnp.allclose(z2, z2_ref, atol=1e-5), "latent mismatch (large batch)"
    assert jnp.allclose(out2, out2_ref, atol=1e-5), "reconstruction mismatch (large batch)"

    # --- optional bf16-MXU path (halves x read traffic on bf16-native MXUs);
    #     f32 accumulation + f32 epilogue, so only ~1e-2-level deviation expected ---
    out3, z3 = autoencoder_linear(x2, w_enc, b_enc, w_dec, b_dec,
                                  compute_dtype=jnp.bfloat16)
    jax.block_until_ready((out3, z3))
    assert jnp.allclose(z3, z2_ref, atol=3e-2, rtol=3e-2), "latent mismatch (bf16 path)"
    assert jnp.allclose(out3, out2_ref, atol=3e-2, rtol=3e-2), "recon mismatch (bf16 path)"

    print("KERNEL_OK")
</pallas_src>

<mosaic_0001>
module attributes {stable_mosaic.version = 11 : i64} {
  func.func @autoencoder_kernel(%arg0: i32, %arg1: memref<8x16xf32, #tpu.memory_space<vmem>>, %arg2: memref<16x8xf32, #tpu.memory_space<vmem>>, %arg3: memref<1x8xf32, #tpu.memory_space<vmem>>, %arg4: memref<8x16xf32, #tpu.memory_space<vmem>>, %arg5: memref<1x16xf32, #tpu.memory_space<vmem>>, %arg6: memref<8x16xf32, #tpu.memory_space<vmem>>, %arg7: memref<8x8xf32, #tpu.memory_space<vmem>>) attributes {dimension_semantics = [#tpu.dimension_semantics<parallel>], iteration_bounds = array<i64: 1>, scalar_prefetch = 0 : i64, scratch_operands = 0 : i64, tpu.core_type = #tpu.core_type<tc>, window_params = [{transform_indices = @transform_0, window_bounds = array<i64: 8, 16>}, {pipeline_mode = #tpu.pipeline_mode<synchronous>, transform_indices = @transform_1, window_bounds = array<i64: 16, 8>}, {pipeline_mode = #tpu.pipeline_mode<synchronous>, transform_indices = @transform_2, window_bounds = array<i64: 1, 8>}, {pipeline_mode = #tpu.pipeline_mode<synchronous>, transform_indices = @transform_3, window_bounds = array<i64: 8, 16>}, {pipeline_mode = #tpu.pipeline_mode<synchronous>, transform_indices = @transform_4, window_bounds = array<i64: 1, 16>}, {transform_indices = @transform_5, window_bounds = array<i64: 8, 16>}, {transform_indices = @transform_6, window_bounds = array<i64: 8, 8>}]} {
    %c0 = arith.constant 0 : index
    %c0_0 = arith.constant 0 : index
    %0 = vector.load %arg1[%c0, %c0_0] : memref<8x16xf32, #tpu.memory_space<vmem>>, vector<8x16xf32>
    %c0_1 = arith.constant 0 : index
    %c0_2 = arith.constant 0 : index
    %1 = vector.load %arg2[%c0_1, %c0_2] : memref<16x8xf32, #tpu.memory_space<vmem>>, vector<16x8xf32>
    %cst = arith.constant dense<0.000000e+00> : vector<8x8xf32>
    %2 = tpu.matmul %0, %1, %cst {dimension_numbers = #tpu.dot_dimension_numbers<[1], [0], [0], [1], [0, 0, 1, 1], [], []>} : vector<8x16xf32>, vector<16x8xf32>, vector<8x8xf32> -> vector<8x8xf32>
    %c0_3 = arith.constant 0 : index
    %c0_4 = arith.constant 0 : index
    %3 = vector.load %arg3[%c0_3, %c0_4] : memref<1x8xf32, #tpu.memory_space<vmem>>, vector<1x8xf32>
    %4 = vector.broadcast %3 : vector<1x8xf32> to vector<8x8xf32>
    %5 = arith.addf %2, %4 : vector<8x8xf32>
    %cst_5 = arith.constant 0.000000e+00 : f32
    %6 = vector.broadcast %cst_5 : f32 to vector<8x8xf32>
    %7 = arith.maximumf %5, %6 : vector<8x8xf32>
    %c0_6 = arith.constant 0 : index
    %c0_7 = arith.constant 0 : index
    %8 = vector.load %arg7[%c0_6, %c0_7] : memref<8x8xf32, #tpu.memory_space<vmem>>, vector<8x8xf32>
    tpu.vector_store %arg7[%c0_6, %c0_7], %7 {strides = array<i32>} : memref<8x8xf32, #tpu.memory_space<vmem>>, vector<8x8xf32>,
    %c0_8 = arith.constant 0 : index
    %c0_9 = arith.constant 0 : index
    %9 = vector.load %arg4[%c0_8, %c0_9] : memref<8x16xf32, #tpu.memory_space<vmem>>, vector<8x16xf32>
    %cst_10 = arith.constant dense<0.000000e+00> : vector<8x16xf32>
    %10 = tpu.matmul %7, %9, %cst_10 {dimension_numbers = #tpu.dot_dimension_numbers<[1], [0], [0], [1], [0, 0, 1, 1], [], []>} : vector<8x8xf32>, vector<8x16xf32>, vector<8x16xf32> -> vector<8x16xf32>
    %c0_11 = arith.constant 0 : index
    %c0_12 = arith.constant 0 : index
    %11 = vector.load %arg5[%c0_11, %c0_12] : memref<1x16xf32, #tpu.memory_space<vmem>>, vector<1x16xf32>
    %12 = vector.broadcast %11 : vector<1x16xf32> to vector<8x16xf32>
    %13 = arith.addf %10, %12 : vector<8x16xf32>
    %c0_13 = arith.constant 0 : index
    %c0_14 = arith.constant 0 : index
    %14 = vector.load %arg6[%c0_13, %c0_14] : memref<8x16xf32, #tpu.memory_space<vmem>>, vector<8x16xf32>
    tpu.vector_store %arg6[%c0_13, %c0_14], %13 {strides = array<i32>} : memref<8x16xf32, #tpu.memory_space<vmem>>, vector<8x16xf32>,
    return
  }
  func.func @transform_0(%arg0: i32) -> (i32, i32) {
    %c0_i32 = arith.constant 0 : i32
    %c0_i32_0 = arith.constant 0 : i32
    return %arg0, %c0_i32 : i32, i32
  }
  func.func @transform_1(%arg0: i32) -> (i32, i32) {
    %c0_i32 = arith.constant 0 : i32
    %c0_i32_0 = arith.constant 0 : i32
    %c0_i32_1 = arith.constant 0 : i32
    return %c0_i32, %c0_i32_0 : i32, i32
  }
  func.func @transform_2(%arg0: i32) -> (i32, i32) {
    %c0_i32 = arith.constant 0 : i32
    %c0_i32_0 = arith.constant 0 : i32
    %c0_i32_1 = arith.constant 0 : i32
    return %c0_i32, %c0_i32_0 : i32, i32
  }
  func.func @transform_3(%arg0: i32) -> (i32, i32) {
    %c0_i32 = arith.constant 0 : i32
    %c0_i32_0 = arith.constant 0 : i32
    %c0_i32_1 = arith.constant 0 : i32
    return %c0_i32, %c0_i32_0 : i32, i32
  }
  func.func @transform_4(%arg0: i32) -> (i32, i32) {
    %c0_i32 = arith.constant 0 : i32
    %c0_i32_0 = arith.constant 0 : i32
    %c0_i32_1 = arith.constant 0 : i32
    return %c0_i32, %c0_i32_0 : i32, i32
  }
  func.func @transform_5(%arg0: i32) -> (i32, i32) {
    %c0_i32 = arith.constant 0 : i32
    %c0_i32_0 = arith.constant 0 : i32
    return %arg0, %c0_i32 : i32, i32
  }
  func.func @transform_6(%arg0: i32) -> (i32, i32) {
    %c0_i32 = arith.constant 0 : i32
    %c0_i32_0 = arith.constant 0 : i32
    return %arg0, %c0_i32 : i32, i32
  }
}

</mosaic_0001>

<llo_original>
// kernel: autoencoder_linear.1
$region0: #{autoencoder_linear.1}
  #allocation0 [shape = 'u32[]', space=smem, size = 0x4, offset = 0x4, fixed_abs, tag = 'smem constant byte address 0x4 - core index']
  #allocation1 [shape = 'u32[144,128]{1,0:T(1,128)}', space=vmem, size = 0x12000, scoped, tag = 'internal scratch']
  %s0 = inlined_call_operand.vmem [shape: f32[8,16], index: 0, kind: input, shape index: {}]
  %s1 = inlined_call_operand.vmem [shape: f32[16,8], index: 1, kind: input, shape index: {}]
  %s2 = inlined_call_operand.vmem [shape: f32[1,8], index: 2, kind: input, shape index: {}]
  %s3 = inlined_call_operand.vmem [shape: f32[8,16], index: 3, kind: input, shape index: {}]
  %s4 = inlined_call_operand.vmem [shape: f32[1,16], index: 4, kind: input, shape index: {}]
  %s5 = inlined_call_operand.hbm [shape: f32[8,16], index: 5, kind: output, shape index: {0}]
  %s6 = inlined_call_operand.hbm [shape: f32[8,8], index: 6, kind: output, shape index: {1}]
  %7 = xla_tuple %s5, %s6
  %s8 = sld [smem:[#allocation0]]
  $region38: #{autoencoder_linear.1} parent=0
    _
  %s10 = ssub.s32 1, %s8
  %s11 = scalar_select 0, %s10, %s8
  $region1: #{autoencoder_linear.1} parent=0
    #allocation2 [shape = 'u8[4096]{0}', space=vmem, size = 0x1000, scoped, tag = 'output window, operand 0, single buffered']
    #allocation3 [shape = 's32[1]{0}', space=sflag, size = 0x4, scoped, tag = 'scoped memory for autoencoder_linear.1']
    #allocation4 [shape = 'u8[4096]{0}', space=vmem, size = 0x1000, scoped, tag = 'output window, operand 1, single buffered']
    #allocation5 [shape = 's32[1]{0}', space=sflag, size = 0x4, scoped, tag = 'scoped memory for autoencoder_linear.1']
    %12 = vsyncpa [#allocation3], 0
    %13 = vsyncpa [#allocation5], 0
    // Predicated region
    $region2: #{autoencoder_linear.1} parent=1 // pred_check
      _
    $region3: #{autoencoder_linear.1} parent=1 // pred_check_branch
      %15 = sbr.rel (0) target = $region5
    $region4: #{autoencoder_linear.1} parent=1 // pred_region
      _
    $region5: #{autoencoder_linear.1} parent=1 // pred_fallthru
      _
    // Predicated region
    $region6: #{autoencoder_linear.1} parent=1 // pred_check
      _
    $region7: #{autoencoder_linear.1} parent=1 // pred_check_branch
      %17 = sbr.rel (0) target = $region9
    $region8: #{autoencoder_linear.1} parent=1 // pred_region
      _
    $region9: #{autoencoder_linear.1} parent=1 // pred_fallthru
      _
    // Predicated region
    $region10: #{autoencoder_linear.1} parent=1 // pred_check
      _
    $region11: #{autoencoder_linear.1} parent=1 // pred_check_branch
      %19 = sbr.rel (0) target = $region13
    $region12: #{autoencoder_linear.1} parent=1 // pred_region
      _
    $region13: #{autoencoder_linear.1} parent=1 // pred_fallthru
      _
    // Predicated region
    $region14: #{autoencoder_linear.1} parent=1 // pred_check
      _
    $region15: #{autoencoder_linear.1} parent=1 // pred_check_branch
      %21 = sbr.rel (0) target = $region17
    $region16: #{autoencoder_linear.1} parent=1 // pred_region
      _
    $region17: #{autoencoder_linear.1} parent=1 // pred_fallthru
      _
    // Predicated region
    $region18: #{autoencoder_linear.1} parent=1 // pred_check
      _
    $region19: #{autoencoder_linear.1} parent=1 // pred_check_branch
      %23 = sbr.rel (0) target = $region21
    $region20: #{autoencoder_linear.1} parent=1 // pred_region
      _
    $region21: #{autoencoder_linear.1} parent=1 // pred_fallthru
      _
    %v24 = vld [vmem:[%s0] sm:$0xff]
    %v25 = vld [vmem:[%s1] sm:$0xff]
    %v26 = vld [vmem:[%s1 + $0x8] sm:$0xff]
    %v27 = vld [vmem:[%s2] sm:$0x1]
    %v29 = vlaneseq
    %v30 = vshrl.u32 %v29, 7
    %v31 = vsub.s32 0, %v30
    %v32 = vrot.slane %v27, %v31
    %vm34 = vcmask 130048
    %v36 = vsel %vm34, %v24, 0
    %38 = vmatprep.subr.mxu0 0.0
    %39 = vmatpush1.msra.mxu0 %v25
    %40 = vmatprep.subr.mxu0 0.0
    %41 = vmatpush1.msra.mxu0 %v26
    %42 = vmatprep.subr.mxu0 0.0
    %43 = vmatpush1.msra.mxu0 0.0
    %44 = vmatprep.subr.mxu0 0.0
    %45 = vmatpush1.msra.mxu0 0.0
    %46 = vmatprep.subr.mxu0 0.0
    %47 = vmatpush1.msra.mxu0 0.0
    %48 = vmatprep.subr.mxu0 0.0
    %49 = vmatpush1.msra.mxu0 0.0
    %50 = vmatprep.subr.mxu0 0.0
    %51 = vmatpush1.msra.mxu0 0.0
    %52 = vmatprep.subr.mxu0 0.0
    %53 = vmatpush1.msra.mxu0 0.0
    %54 = vmatprep.subr.mxu0 0.0
    %55 = vmatpush1.msra.mxu0 0.0
    %56 = vmatprep.subr.mxu0 0.0
    %57 = vmatpush1.msra.mxu0 0.0
    %58 = vmatprep.subr.mxu0 0.0
    %59 = vmatpush1.msra.mxu0 0.0
    %60 = vmatprep.subr.mxu0 0.0
    %61 = vmatpush1.msra.mxu0 0.0
    %62 = vmatprep.subr.mxu0 0.0
    %63 = vmatpush1.msra.mxu0 0.0
    %64 = vmatprep.subr.mxu0 0.0
    %65 = vmatpush1.msra.mxu0 0.0
    %66 = vmatprep.subr.mxu0 0.0
    %67 = vmatpush1.msra.mxu0 0.0
    %68 = vmatprep.subr.mxu0 0.0
    %69 = vmatpush1.msra.mxu0 0.0
    %70 = vmatprep.subr.mxu0 0.0
    %71 = vmatpush1.msra.mxu0 0.0
    %72 = vmatprep.subr.mxu0 0.0
    %73 = vmatpush1.msra.mxu0 0.0
    %74 = vmatprep.subr.mxu0 0.0
    %75 = vmatpush1.msra.mxu0 0.0
    %76 = vmatprep.subr.mxu0 0.0
    %77 = vmatpush1.msra.mxu0 0.0
    %78 = vmatprep.subr.mxu0 0.0
    %79 = vmatpush1.msra.mxu0 0.0
    %80 = vmatprep.subr.mxu0 0.0
    %81 = vmatpush1.msra.mxu0 0.0
    %82 = vmatprep.subr.mxu0 0.0
    %83 = vmatpush1.msra.mxu0 0.0
    %84 = vmatprep.subr.mxu0 0.0
    %85 = vmatpush1.msra.mxu0 0.0
    %86 = vmatprep.subr.mxu0 0.0
    %87 = vmatpush1.msra.mxu0 0.0
    %88 = vmatprep.subr.mxu0 0.0
    %89 = vmatpush1.msra.mxu0 0.0
    %90 = vmatprep.subr.mxu0 0.0
    %91 = vmatpush1.msra.mxu0 0.0
    %92 = vmatprep.subr.mxu0 0.0
    %93 = vmatpush1.msra.mxu0 0.0
    %94 = vmatprep.subr.mxu0 0.0
    %95 = vmatpush1.msra.mxu0 0.0
    %96 = vmatprep.subr.mxu0 0.0
    %97 = vmatpush1.msra.mxu0 0.0
    %98 = vmatprep.subr.mxu0 0.0
    %99 = vmatpush1.msra.mxu0 0.0
    %100 = vmatprep.subr.mxu0 0.0
    %101 = vmatpush1.msra.mxu0 0.0
    %102 = vmatprep.mubr.f32.mxu0 0.0
    %103 = vmatmul.mubr.f32.gmra.mrb[0].mxu0 %v36
    %v104 = vpop.f32.mrb[0].mxu0
    %v105 = vadd.f32 %v32, %v104
    %v106 = vpop.f32.mrb[0].mxu0
    %107 = vdwg.mxu0
    %v108 = vmax.f32 %v105, 0.0
    %vm109 = vcmask 64512
    %110 = vst.msk [vmem:[#allocation4] sm:$0xff] %vm109, %v108
    %v111 = vld [vmem:[%s3] sm:$0xff]
    %v112 = vld [vmem:[%s4] sm:$0x1]
    %v114 = vlaneseq
    %v115 = vshrl.u32 %v114, 7
    %v116 = vsub.s32 0, %v115
    %v117 = vrot.slane %v112, %v116
    %v120 = vsel %vm109, %v108, 0
    %122 = vmatprep.subr.mxu0 0.0
    %123 = vmatpush1.msra.mxu0 %v111
    %124 = vmatprep.subr.mxu0 0.0
    %125 = vmatpush1.msra.mxu0 0.0
    %126 = vmatprep.subr.mxu0 0.0
    %127 = vmatpush1.msra.mxu0 0.0
    %128 = vmatprep.subr.mxu0 0.0
    %129 = vmatpush1.msra.mxu0 0.0
    %130 = vmatprep.subr.mxu0 0.0
    %131 = vmatpush1.msra.mxu0 0.0
    %132 = vmatprep.subr.mxu0 0.0
    %133 = vmatpush1.msra.mxu0 0.0
    %134 = vmatprep.subr.mxu0 0.0
    %135 = vmatpush1.msra.mxu0 0.0
    %136 = vmatprep.subr.mxu0 0.0
    %137 = vmatpush1.msra.mxu0 0.0
    %138 = vmatprep.subr.mxu0 0.0
    %139 = vmatpush1.msra.mxu0 0.0
    %140 = vmatprep.subr.mxu0 0.0
    %141 = vmatpush1.msra.mxu0 0.0
    %142 = vmatprep.subr.mxu0 0.0
    %143 = vmatpush1.msra.mxu0 0.0
    %144 = vmatprep.subr.mxu0 0.0
    %145 = vmatpush1.msra.mxu0 0.0
    %146 = vmatprep.subr.mxu0 0.0
    %147 = vmatpush1.msra.mxu0 0.0
    %148 = vmatprep.subr.mxu0 0.0
    %149 = vmatpush1.msra.mxu0 0.0
    %150 = vmatprep.subr.mxu0 0.0
    %151 = vmatpush1.msra.mxu0 0.0
    %152 = vmatprep.subr.mxu0 0.0
    %153 = vmatpush1.msra.mxu0 0.0
    %154 = vmatprep.subr.mxu0 0.0
    %155 = vmatpush1.msra.mxu0 0.0
    %156 = vmatprep.subr.mxu0 0.0
    %157 = vmatpush1.msra.mxu0 0.0
    %158 = vmatprep.subr.mxu0 0.0
    %159 = vmatpush1.msra.mxu0 0.0
    %160 = vmatprep.subr.mxu0 0.0
    %161 = vmatpush1.msra.mxu0 0.0
    %162 = vmatprep.subr.mxu0 0.0
    %163 = vmatpush1.msra.mxu0 0.0
    %164 = vmatprep.subr.mxu0 0.0
    %165 = vmatpush1.msra.mxu0 0.0
    %166 = vmatprep.subr.mxu0 0.0
    %167 = vmatpush1.msra.mxu0 0.0
    %168 = vmatprep.subr.mxu0 0.0
    %169 = vmatpush1.msra.mxu0 0.0
    %170 = vmatprep.subr.mxu0 0.0
    %171 = vmatpush1.msra.mxu0 0.0
    %172 = vmatprep.subr.mxu0 0.0
    %173 = vmatpush1.msra.mxu0 0.0
    %174 = vmatprep.subr.mxu0 0.0
    %175 = vmatpush1.msra.mxu0 0.0
    %176 = vmatprep.subr.mxu0 0.0
    %177 = vmatpush1.msra.mxu0 0.0
    %178 = vmatprep.subr.mxu0 0.0
    %179 = vmatpush1.msra.mxu0 0.0
    %180 = vmatprep.subr.mxu0 0.0
    %181 = vmatpush1.msra.mxu0 0.0
    %182 = vmatprep.subr.mxu0 0.0
    %183 = vmatpush1.msra.mxu0 0.0
    %184 = vmatprep.subr.mxu0 0.0
    %185 = vmatpush1.msra.mxu0 0.0
    %186 = vmatprep.mubr.f32.mxu0 0.0
    %187 = vmatmul.mubr.f32.gmra.mrb[0].mxu0 %v120
    %v188 = vpop.f32.mrb[0].mxu0
    %v189 = vadd.f32 %v117, %v188
    %v190 = vpop.f32.mrb[0].mxu0
    %191 = vdwg.mxu0
    %192 = vst.msk [vmem:[#allocation2] sm:$0xff] %vm34, %v189
    // Predicated region
    $region22: #{autoencoder_linear.1} parent=1 // pred_check
      _
    $region23: #{autoencoder_linear.1} parent=1 // pred_check_branch
      %194 = sbr.rel (0) target = $region25
    $region24: #{autoencoder_linear.1} parent=1 // pred_region
      %s196 = ssub.s32 128, 128
      %197 = vsyncadd [#allocation3], %s196
      %s199 = sshll.u32 [#allocation2], 4
      %s200 = int_to_ptr.vmem [resolvable:$true] %s199
      %202 = dma.vmem_to_hbm [thread:$0]  %s200, 128, %s5, [#allocation3]
    $region25: #{autoencoder_linear.1} parent=1 // pred_fallthru
      _
    // Predicated region
    $region26: #{autoencoder_linear.1} parent=1 // pred_check
      _
    $region27: #{autoencoder_linear.1} parent=1 // pred_check_branch
      %204 = sbr.rel (0) target = $region29
    $region28: #{autoencoder_linear.1} parent=1 // pred_region
      %s206 = ssub.s32 128, 128
      %207 = vsyncadd [#allocation5], %s206
      %s209 = sshll.u32 [#allocation4], 4
      %s210 = int_to_ptr.vmem [resolvable:$true] %s209
      %212 = dma.vmem_to_hbm [thread:$0]  %s210, 128, %s6, [#allocation5]
    $region29: #{autoencoder_linear.1} parent=1 // pred_fallthru
      _
    // Predicated region
    $region30: #{autoencoder_linear.1} parent=1 // pred_check
      _
    $region31: #{autoencoder_linear.1} parent=1 // pred_check_branch
      %214 = sbr.rel (0) target = $region33
    $region32: #{autoencoder_linear.1} parent=1 // pred_region
      %215 = dma.done [#allocation3], 128
    $region33: #{autoencoder_linear.1} parent=1 // pred_fallthru
      _
    // Predicated region
    $region34: #{autoencoder_linear.1} parent=1 // pred_check
      _
    $region35: #{autoencoder_linear.1} parent=1 // pred_check_branch
      %217 = sbr.rel (0) target = $region37
    $region36: #{autoencoder_linear.1} parent=1 // pred_region
      %218 = dma.done [#allocation5], 128
    $region37: #{autoencoder_linear.1} parent=1 // pred_fallthru
      _
    %219 = vsyncpa [#allocation3], 1
    %220 = vsyncpa [#allocation5], 1

</llo_original>
